<compile_context>
chip_gen: v6e
topology: v6e:2x2x1
jax: 0.10.0
libtpu: 0.0.40
codegen_flags: <defaults>
</compile_context>

<pallas_src>
import jax
import jax.numpy as jnp
from jax.experimental import pallas as pl
from jax.experimental.pallas import tpu as pltpu


_LANE = 128
_LANE_CANDIDATES = (512, 256, 128)  # lane-dense slab widths (multiples of 128)


def _sublane_for(dtype) -> int:
    """Minimum second-minor (sublane) multiple for a packed dtype tile."""
    itemsize = jnp.dtype(dtype).itemsize
    if itemsize >= 4:
        return 8
    if itemsize == 2:
        return 16
    return 32


def _tpu_vmem_bytes() -> int:
    """Best-effort per-core VMEM capacity; conservative (v7x-sized) fallback."""
    try:
        info = pltpu.get_tpu_info()
        return int(getattr(info, "vmem_capacity_bytes", 64 << 20))
    except Exception:
        return 64 << 20


def _hw_tuning():
    """Returns (target_block_bytes, vmem_limit_bytes, min_row_blocks)."""
    vmem = _tpu_vmem_bytes()
    if vmem >= (100 << 20):
        # v5e / v6e: 128 MiB physical VMEM, single TensorCore.
        return 8 << 20, 64 << 20, 1
    # v7x-class (64 MiB physical VMEM, 2 TensorCores) or unknown hardware.
    # 4 MiB block * (in + out) * double-buffer = 16 MiB < 32 MiB scoped limit.
    return 4 << 20, 32 << 20, 2


def _choose_tile_rows(rows: int, cols: int, itemsize: int, sublane: int,
                      target_block_bytes: int, min_blocks: int) -> int:
    """Byte-targeted, sublane-aligned row tile; prefers a divisor of rows."""
    target_rows = max(sublane,
                      (target_block_bytes // (cols * itemsize)) // sublane * sublane)
    if min_blocks > 1:
        # Force >= min_blocks grid steps so every TensorCore issues DMAs (v7x).
        per_core = -(-rows // min_blocks)                    # cdiv
        per_core = max(sublane, -(-per_core // sublane) * sublane)
        target_rows = min(target_rows, per_core)
    if rows <= target_rows:
        return rows  # single full-extent block (legal even if not sublane-aligned)
    # Prefer the largest sublane-multiple divisor of rows <= target_rows
    # (avoids a masked / padded final block).
    t = target_rows
    while t >= sublane:
        if rows % t == 0:
            if t * cols * itemsize >= target_block_bytes // 4:
                return t
            break
        t -= sublane
    return target_rows  # partial final block handled by Pallas boundary masking


def _encoding_identity_kernel(x_ref, o_ref):
    # Identity encoding: lane-dense pass-through of one (tile_rows, cols) tile.
    o_ref[...] = x_ref[...]


class Encoding:
    """JAX/Pallas port of the abstract `Encoding` field component.

    Args:
        in_dim: Input dimension of tensor (must be > 0).
        use_kernel: if False (default), forward is a pure identity reshape —
            no pallas_call, no HBM round trip.  Set True only to exercise the
            Pallas copy-kernel template a concrete encoding would build on.
        min_kernel_elements: below this total element count the pallas_call is
            skipped even when use_kernel=True.
    """

    def __init__(self, in_dim: int, *, use_kernel: bool = False,
                 min_kernel_elements: int = 1 << 15) -> None:
        if in_dim <= 0:
            raise ValueError("Input dimension should be greater than zero")
        self.in_dim = in_dim
        # Identity realization of the abstract encoding: out_dim == in_dim.
        self.out_dim = in_dim
        self._use_kernel = use_kernel
        self._min_kernel_elements = min_kernel_elements

    def set_in_dim(self, in_dim: int) -> None:
        if in_dim <= 0:
            raise ValueError("Input dimension should be greater than zero")
        self.in_dim = in_dim
        self.out_dim = in_dim

    def get_out_dim(self) -> int:
        if self.out_dim is None:
            raise ValueError("Output dimension has not been set")
        return self.out_dim

    def __call__(self, in_tensor: jax.Array) -> jax.Array:
        """forward: (*bs, in_dim) -> (*bs, out_dim)."""
        if in_tensor.shape[-1] != self.in_dim:
            raise ValueError(
                f"expected last dim {self.in_dim}, got {in_tensor.shape[-1]}"
            )
        out_shape = (*in_tensor.shape[:-1], self.out_dim)

        # Default (and fastest) path: identity encoding needs no data movement.
        if not self._use_kernel:
            return in_tensor.reshape(out_shape)

        total = in_tensor.size
        itemsize = jnp.dtype(in_tensor.dtype).itemsize
        # Tiny inputs or shapes with no pad-free lane-dense view: skip the
        # kernel (launch / grid-step overhead would dominate a zero-work op).
        if total < self._min_kernel_elements or total % _LANE != 0:
            return in_tensor.reshape(out_shape)

        # Lane-dense slab: (rows, cols) with cols a multiple of 128 so every
        # store is a full-lane unmasked vst.
        cols = next(c for c in _LANE_CANDIDATES if total % c == 0)
        rows = total // cols
        x2d = in_tensor.reshape(rows, cols)

        target_block_bytes, vmem_limit_bytes, min_blocks = _hw_tuning()
        sublane = _sublane_for(in_tensor.dtype)
        tile_rows = _choose_tile_rows(rows, cols, itemsize, sublane,
                                      target_block_bytes, min_blocks)
        grid = (pl.cdiv(rows, tile_rows),)

        out2d = pl.pallas_call(
            _encoding_identity_kernel,
            out_shape=jax.ShapeDtypeStruct((rows, cols), in_tensor.dtype),
            grid=grid,
            in_specs=[pl.BlockSpec((tile_rows, cols), lambda i: (i, 0))],
            out_specs=pl.BlockSpec((tile_rows, cols), lambda i: (i, 0)),
            # Pure-DMA kernel: tell XLA the true (mem-bound) cost.
            cost_estimate=pl.CostEstimate(
                flops=0, transcendentals=0,
                bytes_accessed=2 * total * itemsize),
            compiler_params=pltpu.CompilerParams(
                # Row axis is fully independent -> shard across TCs on v7x.
                dimension_semantics=("parallel",),
                vmem_limit_bytes=vmem_limit_bytes,
            ),
        )(x2d)

        return out2d.reshape(out_shape)


if __name__ == "__main__":
    key = jax.random.PRNGKey(0)
    k1, k2, k3 = jax.random.split(key, 3)

    # 1) Default path: identity encoding, no pallas_call (the recommended mode).
    enc_default = Encoding(in_dim=32)
    x = jax.random.normal(k1, (2, 256, 32), dtype=jnp.float32)
    out = jax.block_until_ready(enc_default(x))
    assert out.shape == (2, 256, enc_default.get_out_dim())
    assert jnp.array_equal(out, x), "identity encoding mismatch (default path)"

    # 2) Kernel-template path: 16384 elems -> lane-dense slab (32, 512),
    #    byte-targeted row tiles (>=2 blocks on v7x-class hardware).
    enc_kernel = Encoding(in_dim=32, use_kernel=True, min_kernel_elements=1024)
    out_k = jax.block_until_ready(enc_kernel(x))
    assert out_k.shape == (2, 256, 32)
    assert jnp.array_equal(out_k, x), "identity encoding mismatch (kernel path)"

    # 3) Kernel-template path with rows (25) not sublane-divisible: full-extent
    #    or boundary-masked blocks, still exact.
    x2 = jax.random.normal(k2, (2, 200, 32), dtype=jnp.float32)
    out2 = jax.block_until_ready(enc_kernel(x2))
    assert out2.shape == (2, 200, 32)
    assert jnp.array_equal(out2, x2), "identity encoding mismatch (boundary path)"

    # 4) Tiny input: always the pure-identity path, even with use_kernel=True.
    enc_small = Encoding(in_dim=4, use_kernel=True)
    x3 = jax.random.normal(k3, (2, 8, 4), dtype=jnp.float32)
    out3 = jax.block_until_ready(enc_small(x3))
    assert out3.shape == (2, 8, 4)
    assert jnp.array_equal(out3, x3), "identity encoding mismatch (tiny path)"

    print("KERNEL_OK")
</pallas_src>

<mosaic_0001>
module attributes {stable_mosaic.version = 11 : i64} {
  func.func @_encoding_identity_kernel(%arg0: i32, %arg1: memref<16x512xf32, #tpu.memory_space<vmem>>, %arg2: memref<16x512xf32, #tpu.memory_space<vmem>>) attributes {dimension_semantics = [#tpu.dimension_semantics<parallel>], iteration_bounds = array<i64: 2>, scalar_prefetch = 0 : i64, scratch_operands = 0 : i64, tpu.core_type = #tpu.core_type<tc>, window_params = [{transform_indices = @transform_0, window_bounds = array<i64: 16, 512>}, {transform_indices = @transform_1, window_bounds = array<i64: 16, 512>}]} {
    %c0 = arith.constant 0 : index
    %c0_0 = arith.constant 0 : index
    %0 = vector.load %arg1[%c0, %c0_0] : memref<16x512xf32, #tpu.memory_space<vmem>>, vector<16x512xf32>
    %c0_1 = arith.constant 0 : index
    %c0_2 = arith.constant 0 : index
    %1 = vector.load %arg2[%c0_1, %c0_2] : memref<16x512xf32, #tpu.memory_space<vmem>>, vector<16x512xf32>
    tpu.vector_store %arg2[%c0_1, %c0_2], %0 {strides = array<i32>} : memref<16x512xf32, #tpu.memory_space<vmem>>, vector<16x512xf32>,
    return
  }
  func.func @transform_0(%arg0: i32) -> (i32, i32) {
    %c0_i32 = arith.constant 0 : i32
    %c0_i32_0 = arith.constant 0 : i32
    return %arg0, %c0_i32 : i32, i32
  }
  func.func @transform_1(%arg0: i32) -> (i32, i32) {
    %c0_i32 = arith.constant 0 : i32
    %c0_i32_0 = arith.constant 0 : i32
    return %arg0, %c0_i32 : i32, i32
  }
}

</mosaic_0001>

<llo_original>
// kernel: tpu_custom_call.1
$region0: #{tpu_custom_call.1}
  #allocation0 [shape = 'u32[]', space=smem, size = 0x4, offset = 0x4, fixed_abs, tag = 'smem constant byte address 0x4 - core index']
  #allocation1 [shape = 'u32[144,128]{1,0:T(1,128)}', space=vmem, size = 0x12000, scoped, tag = 'internal scratch']
  %s0 = inlined_call_operand.hbm [shape: f32[32,512], index: 0, kind: input, shape index: {}]
  %s1 = inlined_call_operand.hbm [shape: f32[32,512], index: 1, kind: output, shape index: {}]
  %s2 = sld [smem:[#allocation0]]
  $region41: #{tpu_custom_call.1} parent=0
    _
  %s4 = ssub.s32 1, %s2
  %s5 = scalar_select 0, %s4, %s2
  $region1: #{tpu_custom_call.1} parent=0
    #allocation2 [shape = 'u8[65536]{0}', space=vmem, size = 0x10000, scoped, tag = 'input window, operand 0']
    #allocation3 [shape = 's32[2]{0}', space=sflag, size = 0x8, scoped, tag = 'scoped memory for tpu_custom_call.1']
    #allocation4 [shape = 's32[2]{0}', space=sflag, size = 0x8, scoped, tag = 'scoped memory for tpu_custom_call.1']
    #allocation5 [shape = 'u8[65536]{0}', space=vmem, size = 0x10000, scoped, tag = 'output window, operand 0']
    %6 = vsyncpa [#allocation3], 0
    %s7 = scalar_lea.sflag [#allocation3], 1
    %8 = vsyncpa %s7, 0
    %9 = vsyncpa [#allocation4], 0
    %s10 = scalar_lea.sflag [#allocation4], 1
    %11 = vsyncpa %s10, 0
    loop: start=0, step=1, limit=4
    $region2: #{tpu_custom_call.1} parent=1 // loop_pre_header
      _
    $region3: #{tpu_custom_call.1} parent=1 // loop_header
      %s13 = sphi 0, %s17
      %p14 = scmp.ge.s32.totalorder %s13, 4
      %s23 = sphi 0, %s25
      %s26 = sphi 0, %s23
      %s27 = sphi 0, %s26
      %s43 = sphi 0, %s27
      %s49 = sphi 0, %s51
      %s52 = sphi 0, %s49
      %s53 = sphi 0, %s52
      %s69 = sphi 0, %s53
    $region4: #{tpu_custom_call.1} parent=1 // loop_header_branch
      %16 = sbr.rel (%p14) target = $region8
    $region5: #{tpu_custom_call.1} parent=1 // loop_body
      %s18 = ssub.s32 %s13, 1
      %s19 = ssub.s32 %s13, 2
      %s20 = sadd.s32 %s13, 1
      %s21 = ssub.s32 %s13, %s20
      %p22 = scmp.eq.s32.totalorder %s21, 0
      %s24 = sadd.s32 %s23, 1
      %s25 = scalar_select %p22, %s23, %s24
      %p28 = pneg %p22
      %p29 = scmp.eq.s32.totalorder %s13, 1
      %p30 = por %p28, %p29
      %p31 = scmp.ne.s32.totalorder %s23, %s26
      %p32 = scmp.eq.s32.totalorder %s13, 0
      %p33 = por %p31, %p32
      %p34 = scmp.ne.s32.totalorder %s23, %s26
      %p35 = scmp.eq.s32.totalorder %s18, 1
      %p36 = por %p34, %p35
      %p37 = scmp.ne.s32.totalorder %s26, %s27
      %p38 = scmp.eq.s32.totalorder %s18, 0
      %p39 = por %p37, %p38
      %p40 = scmp.ne.s32.totalorder %s26, %s27
      %p41 = scmp.eq.s32.totalorder %s19, 1
      %p42 = por %p40, %p41
      %p44 = scmp.ne.s32.totalorder %s27, %s43
      %p45 = scmp.eq.s32.totalorder %s19, 0
      %p46 = por %p44, %p45
      %s47 = ssub.s32 %s13, %s20
      %p48 = scmp.eq.s32.totalorder %s47, 0
      %s50 = sadd.s32 %s49, 1
      %s51 = scalar_select %p48, %s49, %s50
      %p54 = pneg %p48
      %p55 = scmp.eq.s32.totalorder %s13, 1
      %p56 = por %p54, %p55
      %p57 = scmp.ne.s32.totalorder %s49, %s52
      %p58 = scmp.eq.s32.totalorder %s13, 0
      %p59 = por %p57, %p58
      %p60 = scmp.ne.s32.totalorder %s49, %s52
      %p61 = scmp.eq.s32.totalorder %s18, 1
      %p62 = por %p60, %p61
      %p63 = scmp.ne.s32.totalorder %s52, %s53
      %p64 = scmp.eq.s32.totalorder %s18, 0
      %p65 = por %p63, %p64
      %p66 = scmp.ne.s32.totalorder %s52, %s53
      %p67 = scmp.eq.s32.totalorder %s19, 1
      %p68 = por %p66, %p67
      %p70 = scmp.ne.s32.totalorder %s53, %s69
      %p71 = scmp.eq.s32.totalorder %s19, 0
      %p72 = por %p70, %p71
      %p73 = scmp.le.s32.totalorder 1, %s13
      %p74 = scmp.lt.s32.totalorder %s13, 3
      %p75 = pnand %p73, %p74
      %p76 = pneg %p75
      // Predicated region
      $region9: #{tpu_custom_call.1} parent=5 // pred_check
        _
      $region10: #{tpu_custom_call.1} parent=5 // pred_check_branch
        %78 = sbr.rel (%p75) target = $region12
      $region11: #{tpu_custom_call.1} parent=5 // pred_region
        %s79 = ssub.s32 %s13, 1
      $region12: #{tpu_custom_call.1} parent=5 // pred_fallthru
        _
      %p80 = scmp.lt.s32.totalorder %s13, 2
      // Predicated region
      $region13: #{tpu_custom_call.1} parent=5 // pred_check
        %p81 = pneg %p80
      $region14: #{tpu_custom_call.1} parent=5 // pred_check_branch
        %83 = sbr.rel (%p81) target = $region16
      $region15: #{tpu_custom_call.1} parent=5 // pred_region
        // Predicated region
        $region17: #{tpu_custom_call.1} parent=15 // pred_check
          %p84 = pneg %p33
        $region18: #{tpu_custom_call.1} parent=15 // pred_check_branch
          %86 = sbr.rel (%p84) target = $region20
        $region19: #{tpu_custom_call.1} parent=15 // pred_region
          %s87 = sand.u32 %s23, 1
          %s88 = scalar_lea.sflag [#allocation3], %s87
          %s89 = sand.u32 %s23, 1
          %s90 = smul.addr %s89, 64
          %s91 = scalar_lea.vmem [#allocation2], %s90
          %s92 = smul.u32 2, %s13
          %s94 = ssub.s32 1024, 1024
          %95 = vsyncadd %s88, %s94
          %s96 = smul.addr %s92, 4
          %s97 = smul.addr %s96, 128
          %s98 = scalar_lea.hbm %s0, %s97
          %s99 = sshll.u32 %s91, 4
          %s100 = int_to_ptr.vmem [resolvable:$true] %s99
          %105 = dma.hbm_to_vmem [thread:$0]  %s98, 1024, %s100, %s88, 512, 512, 32
        $region20: #{tpu_custom_call.1} parent=15 // pred_fallthru
          _
      $region16: #{tpu_custom_call.1} parent=5 // pred_fallthru
        _
      %p106 = scmp.le.s32.totalorder 1, %s13
      %p107 = scmp.lt.s32.totalorder %s13, 3
      %p108 = pnand %p106, %p107
      %p109 = pneg %p108
      // Predicated region
      $region21: #{tpu_custom_call.1} parent=5 // pred_check
        _
      $region22: #{tpu_custom_call.1} parent=5 // pred_check_branch
        %111 = sbr.rel (%p108) target = $region24
      $region23: #{tpu_custom_call.1} parent=5 // pred_region
        %s112 = ssub.s32 %s13, 1
        %s113 = sand.u32 %s26, 1
        %s114 = scalar_lea.sflag [#allocation3], %s113
        %s115 = sand.u32 %s26, 1
        %s116 = smul.addr %s115, 64
        %s117 = scalar_lea.vmem [#allocation2], %s116
        // Predicated region
        $region25: #{tpu_custom_call.1} parent=23 // pred_check
          %p118 = pneg %p39
        $region26: #{tpu_custom_call.1} parent=23 // pred_check_branch
          %120 = sbr.rel (%p118) target = $region28
        $region27: #{tpu_custom_call.1} parent=23 // pred_region
          %121 = dma.done %s114, 1024
        $region28: #{tpu_custom_call.1} parent=23 // pred_fallthru
          _
        %s122 = sand.u32 %s26, 1
        %s123 = scalar_lea.sflag [#allocation3], %s122
        %s124 = sand.u32 %s26, 1
        %s125 = smul.addr %s124, 64
        %s126 = scalar_lea.vmem [#allocation2], %s125
        %p127 = pneg %p39
        %p128 = pneg %p36
        %p129 = pneg %p65
        %p130 = pneg %p62
        %s131 = sand.u32 %s52, 1
        %s132 = scalar_lea.sflag [#allocation4], %s131
        %s133 = sand.u32 %s52, 1
        %s134 = smul.addr %s133, 64
        %s135 = scalar_lea.vmem [#allocation5], %s134
        %s136 = smul.u32 2, %s18
        %s137 = smul.u32 2, %s18
        %v138 = vld [vmem:[%s117] sm:$0xff]
        %v139 = vld [vmem:[%s117 + $0x8] sm:$0xff]
        %v140 = vld [vmem:[%s117 + $0x10] sm:$0xff]
        %v141 = vld [vmem:[%s117 + $0x18] sm:$0xff]
        %v142 = vld [vmem:[%s117 + $0x20] sm:$0xff]
        %v143 = vld [vmem:[%s117 + $0x28] sm:$0xff]
        %v144 = vld [vmem:[%s117 + $0x30] sm:$0xff]
        %v145 = vld [vmem:[%s117 + $0x38] sm:$0xff]
        %146 = vst [vmem:[%s135] sm:$0xff] %v138
        %147 = vst [vmem:[%s135 + $0x8] sm:$0xff] %v139
        %148 = vst [vmem:[%s135 + $0x10] sm:$0xff] %v140
        %149 = vst [vmem:[%s135 + $0x18] sm:$0xff] %v141
        %150 = vst [vmem:[%s135 + $0x20] sm:$0xff] %v142
        %151 = vst [vmem:[%s135 + $0x28] sm:$0xff] %v143
        %152 = vst [vmem:[%s135 + $0x30] sm:$0xff] %v144
        %153 = vst [vmem:[%s135 + $0x38] sm:$0xff] %v145
        %s154 = sand.u32 %s52, 1
        %s155 = scalar_lea.sflag [#allocation4], %s154
        %s156 = sand.u32 %s52, 1
        %s157 = smul.addr %s156, 64
        %s158 = scalar_lea.vmem [#allocation5], %s157
        // Predicated region
        $region29: #{tpu_custom_call.1} parent=23 // pred_check
          %p159 = pneg %p62
        $region30: #{tpu_custom_call.1} parent=23 // pred_check_branch
          %161 = sbr.rel (%p159) target = $region32
        $region31: #{tpu_custom_call.1} parent=23 // pred_region
          %s162 = smul.u32 2, %s18
          %s164 = ssub.s32 1024, 1024
          %165 = vsyncadd %s155, %s164
          %s166 = smul.addr %s162, 4
          %s167 = smul.addr %s166, 128
          %s168 = scalar_lea.hbm %s1, %s167
          %s169 = sshll.u32 %s158, 4
          %s170 = int_to_ptr.vmem [resolvable:$true] %s169
          %175 = dma.vmem_to_hbm [thread:$0]  %s170, 1024, %s168, %s155, 512, 512, 32
        $region32: #{tpu_custom_call.1} parent=23 // pred_fallthru
          _
      $region24: #{tpu_custom_call.1} parent=5 // pred_fallthru
        _
      %p176 = scmp.le.s32.totalorder 2, %s13
      // Predicated region
      $region33: #{tpu_custom_call.1} parent=5 // pred_check
        %p177 = pneg %p176
      $region34: #{tpu_custom_call.1} parent=5 // pred_check_branch
        %179 = sbr.rel (%p177) target = $region36
      $region35: #{tpu_custom_call.1} parent=5 // pred_region
        %s180 = ssub.s32 %s13, 2
        // Predicated region
        $region37: #{tpu_custom_call.1} parent=35 // pred_check
          %p181 = pneg %p68
        $region38: #{tpu_custom_call.1} parent=35 // pred_check_branch
          %183 = sbr.rel (%p181) target = $region40
        $region39: #{tpu_custom_call.1} parent=35 // pred_region
          %s184 = sand.u32 %s53, 1
          %s185 = scalar_lea.sflag [#allocation4], %s184
          %s186 = sand.u32 %s53, 1
          %s187 = smul.addr %s186, 64
          %s188 = scalar_lea.vmem [#allocation5], %s187
          %189 = dma.done %s185, 1024
        $region40: #{tpu_custom_call.1} parent=35 // pred_fallthru
          _
      $region36: #{tpu_custom_call.1} parent=5 // pred_fallthru
        _
    $region6: #{tpu_custom_call.1} parent=1 // loop_footer
      %s17 = sadd.s32 1, %s13
    $region7: #{tpu_custom_call.1} parent=1 // loop_footer_branch
      %12 = sbr.rel target = $region3
    $region8: #{tpu_custom_call.1} parent=1 // loop_exit
      _
    %190 = vsyncpa [#allocation3], 1
    %s191 = scalar_lea.sflag [#allocation3], 1
    %192 = vsyncpa %s191, 1
    %193 = vsyncpa [#allocation4], 1
    %s194 = scalar_lea.sflag [#allocation4], 1
    %195 = vsyncpa %s194, 1

</llo_original>
